<compile_context>
chip_gen: v7x
topology: tpu7x:2x2x1
jax: 0.10.0
libtpu: 0.0.40
codegen_flags: <defaults>
</compile_context>

<pallas_src>
import functools

import jax
import jax.numpy as jnp
from jax import lax
from jax.experimental import pallas as pl
from jax.experimental.pallas import tpu as pltpu


def _round_up(x: int, m: int) -> int:
    return (x + m - 1) // m * m


def _sublane(dtype) -> int:
    """Sublane packing multiple for a dtype (8 f32, 16 bf16, 32 int8/fp8)."""
    return {4: 8, 2: 16, 1: 32}[jnp.dtype(dtype).itemsize]


def _choose_tile(dim: int, target: int, align: int, min_good: int):
    """Pick a tile size along one weight dimension.

    Returns (tile, padded_dim).  Prefers a tile that divides the 128-aligned
    dim exactly (no weight-matrix padding, i.e. no extra HBM pass); falls back
    to padding to a multiple of `target` only when the best divisor tile would
    be degenerately small.
    """
    dim_aligned = _round_up(dim, align)
    if dim_aligned <= target:
        return dim_aligned, dim_aligned
    best = 0
    t = align
    while t <= target:
        if dim_aligned % t == 0:
            best = t
        t += align
    if best >= min_good:
        return best, dim_aligned
    return target, _round_up(dim, target)


# ---------------------------------------------------------------------------
# Pallas kernel: one (tm, tn) output tile, accumulated over the K grid axis.
# ---------------------------------------------------------------------------
def _synapse_matmul_kernel(x_ref, w_ref, o_ref, *, precision):
    # x_ref: (tm, tk) spikes^T tile, w_ref: (tn, tk) weights tile in the
    # natural (num_post, num_pre) layout, o_ref: (tm, tn) f32 output tile.
    # The output block index is constant over the trailing K grid axis, so the
    # o_ref tile stays resident in VMEM and doubles as the accumulator.
    @pl.when(pl.program_id(2) == 0)
    def _init():
        o_ref[...] = jnp.zeros_like(o_ref)

    o_ref[...] += lax.dot_general(
        x_ref[...],
        w_ref[...],
        dimension_numbers=(((1,), (1,)), ((), ())),  # contract both minor dims
        preferred_element_type=jnp.float32,
        precision=precision,
    )


def _synapse_matmul(
    x_t: jax.Array,
    weights: jax.Array,
    *,
    tm_cap: int,
    tn: int,
    tk: int,
    split_n_for_megacore: bool,
    precision,
) -> jax.Array:
    """out (T, num_post) = x_t (T, num_pre) contracted with weights (num_post, num_pre)."""
    t, k = x_t.shape
    n, k2 = weights.shape
    assert k == k2, (x_t.shape, weights.shape)
    assert tn % 128 == 0 and tk % 128 == 0, (tn, tk)

    # --- tile selection -----------------------------------------------------
    sub = _sublane(x_t.dtype)
    # Keep all timesteps in one M block (up to tm_cap) so the weight matrix is
    # streamed from HBM exactly once; avoids the ceil(T/tm) re-stream and the
    # t=130 -> t_p=256 padding blow-up of a fixed tm.
    tm_eff = min(_round_up(t, sub), _round_up(tm_cap, sub))
    t_p = _round_up(t, tm_eff)

    tn_eff, n_p = _choose_tile(n, tn, 128, 256)
    tk_eff, k_p = _choose_tile(k, tk, 128, 512)

    # v7x megacore: make sure at least one "parallel" axis has >= 2 blocks so
    # the second TensorCore isn't idle for the GEMV / single-M-block case.
    if (
        split_n_for_megacore
        and t_p // tm_eff == 1
        and n_p // tn_eff == 1
        and tn_eff % 256 == 0
    ):
        tn_eff //= 2

    # --- padding (spikes are tiny; weights only if dims aren't 128-aligned) --
    if (t_p, k_p) != (t, k):
        x_t = jnp.pad(x_t, ((0, t_p - t), (0, k_p - k)))
    if (n_p, k_p) != (n, k):
        # One-time extra HBM pass only for non-128-aligned weight shapes;
        # store aligned weights to keep the hot path pad-free.
        weights = jnp.pad(weights, ((0, n_p - n), (0, k_p - k)))

    grid = (t_p // tm_eff, n_p // tn_eff, k_p // tk_eff)

    # --- VMEM budget (double-buffered inputs + output block) -----------------
    x_bytes = 2 * tm_eff * tk_eff * x_t.dtype.itemsize
    w_bytes = 2 * tn_eff * tk_eff * weights.dtype.itemsize
    o_bytes = 2 * tm_eff * tn_eff * 4
    est = x_bytes + w_bytes + o_bytes
    assert est <= 40 * 1024 * 1024, (
        f"tile footprint {est} bytes too large for v7x VMEM; shrink tn/tk/tm_cap"
    )
    # Only raise the scoped limit when needed; cap at 48 MiB so v7x's 64 MiB
    # physical VMEM keeps headroom for internal scratch.
    vmem_limit = None if est <= 12 * 1024 * 1024 else min(est + (8 << 20), 48 << 20)

    out_t = pl.pallas_call(
        functools.partial(_synapse_matmul_kernel, precision=precision),
        out_shape=jax.ShapeDtypeStruct((t_p, n_p), jnp.float32),
        grid_spec=pltpu.PrefetchScalarGridSpec(
            num_scalar_prefetch=0,
            grid=grid,
            in_specs=[
                pl.BlockSpec((tm_eff, tk_eff), lambda i, j, kk: (i, kk)),
                pl.BlockSpec((tn_eff, tk_eff), lambda i, j, kk: (j, kk)),
            ],
            out_specs=pl.BlockSpec((tm_eff, tn_eff), lambda i, j, kk: (i, j)),
        ),
        compiler_params=pltpu.CompilerParams(
            dimension_semantics=("parallel", "parallel", "arbitrary"),
            vmem_limit_bytes=vmem_limit,
        ),
    )(x_t, weights)

    return out_t[:t, :n]


def synapse_forward(
    weights: jax.Array,
    pre_spikes: jax.Array,
    *,
    tm_cap: int = 512,
    tn: int = 512,
    tk: int = 1024,
    split_n_for_megacore: bool = True,
    transpose_output: bool = True,
    precision=None,
) -> jax.Array:
    """Equivalent of torch.matmul(weights, pre_spikes).

    weights     : (num_post, num_pre)  -- natural layout, no transpose needed.
    pre_spikes  : (num_pre,) or (num_pre, T).
    Returns float32 (num_post,) or (num_post, T)  (or the lane-dense
    (T, num_post) layout when transpose_output=False).
    `precision` is forwarded to the kernel dot (use lax.Precision.HIGHEST for
    bit-level agreement with an f32 reference at large num_pre).
    """
    squeeze = pre_spikes.ndim == 1
    x_t = pre_spikes[None, :] if squeeze else pre_spikes.T  # (T, num_pre), small

    # Spikes are binary {0, 1}; casting them to the (possibly low-precision)
    # weight dtype is exact and lets the MXU run at its native rate.
    if x_t.dtype != weights.dtype:
        x_t = x_t.astype(weights.dtype)

    out_t = _synapse_matmul(
        x_t,
        weights,
        tm_cap=tm_cap,
        tn=tn,
        tk=tk,
        split_n_for_megacore=split_n_for_megacore,
        precision=precision,
    )  # (T, num_post) f32

    if squeeze:
        return out_t[0]
    # (num_post, T) matches the torch layout; pass transpose_output=False to
    # keep the lane-dense (T, num_post) layout and skip the relayout pass.
    return out_t.T if transpose_output else out_t


# ---------------------------------------------------------------------------
# Deterministic parameter construction mirroring Synapse.__init__.
# ---------------------------------------------------------------------------
def make_synapse_weights(
    key,
    num_pre: int,
    num_post: int,
    connection_prob: float = 1.0,
    weight_scale: float = 0.5,
    weight_offset: float = 0.1,
    dtype=jnp.float32,
) -> jax.Array:
    k_mask, k_w = jax.random.split(key)
    mask = jax.random.uniform(k_mask, (num_post, num_pre)) < connection_prob
    weights = (
        jax.random.uniform(k_w, (num_post, num_pre)) * weight_scale + weight_offset
    )
    # weights.data[~mask] = 0.0
    weights = jnp.where(mask, weights, 0.0).astype(dtype)
    return weights


if __name__ == "__main__":
    key = jax.random.PRNGKey(0)
    k_param, k_spk1, k_spk2, k_param2, k_spk3 = jax.random.split(key, 5)

    num_pre, num_post = 384, 256

    weights = make_synapse_weights(
        k_param, num_pre=num_pre, num_post=num_post, connection_prob=0.8
    )

    # --- case 1: single-timestep spike vector (GEMV path), fp32 weights -----
    spikes_vec = (jax.random.uniform(k_spk1, (num_pre,)) < 0.3).astype(jnp.float32)
    out_vec = jax.block_until_ready(synapse_forward(weights, spikes_vec))
    ref_vec = jnp.matmul(weights, spikes_vec, precision=jax.lax.Precision.HIGHEST)
    assert out_vec.shape == (num_post,), out_vec.shape
    assert jnp.allclose(out_vec, ref_vec, atol=1e-4, rtol=1e-5), (out_vec, ref_vec)

    # --- case 2: batch of timesteps (GEMM path, unaligned T), fp32 weights --
    t_steps = 5
    spikes_seq = (jax.random.uniform(k_spk2, (num_pre, t_steps)) < 0.3).astype(
        jnp.float32
    )
    out_seq = jax.block_until_ready(synapse_forward(weights, spikes_seq))
    ref_seq = jnp.matmul(weights, spikes_seq, precision=jax.lax.Precision.HIGHEST)
    assert out_seq.shape == (num_post, t_steps), out_seq.shape
    assert jnp.allclose(out_seq, ref_seq, atol=1e-4, rtol=1e-5), (out_seq, ref_seq)

    # --- case 3: bf16 weights (halved HBM traffic on the weight stream;
    #             spike products exact, f32 accumulation inside the kernel) ---
    weights_bf16 = weights.astype(jnp.bfloat16)
    out_bf16 = jax.block_until_ready(synapse_forward(weights_bf16, spikes_vec))
    ref_bf16 = jnp.matmul(
        weights_bf16.astype(jnp.float32),
        spikes_vec,
        precision=jax.lax.Precision.HIGHEST,
    )
    assert out_bf16.shape == (num_post,), out_bf16.shape
    assert jnp.allclose(out_bf16, ref_bf16, atol=1e-3, rtol=1e-3), (out_bf16, ref_bf16)

    # --- case 4: non-128-aligned dims (exercises the padding fallback) ------
    num_pre_u, num_post_u, t_u = 200, 100, 3
    weights_u = make_synapse_weights(
        k_param2, num_pre=num_pre_u, num_post=num_post_u, connection_prob=0.9
    )
    spikes_u = (jax.random.uniform(k_spk3, (num_pre_u, t_u)) < 0.3).astype(jnp.float32)
    out_u = jax.block_until_ready(synapse_forward(weights_u, spikes_u))
    ref_u = jnp.matmul(weights_u, spikes_u, precision=jax.lax.Precision.HIGHEST)
    assert out_u.shape == (num_post_u, t_u), out_u.shape
    assert jnp.allclose(out_u, ref_u, atol=1e-4, rtol=1e-5), (out_u, ref_u)

    print("KERNEL_OK")
</pallas_src>

<mosaic_0001>
module attributes {stable_mosaic.version = 11 : i64} {
  func.func @_synapse_matmul_kernel(%arg0: i32, %arg1: i32, %arg2: i32, %arg3: memref<8x384xf32, #tpu.memory_space<vmem>>, %arg4: memref<128x384xf32, #tpu.memory_space<vmem>>, %arg5: memref<8x128xf32, #tpu.memory_space<vmem>>) attributes {dimension_semantics = [#tpu.dimension_semantics<parallel>, #tpu.dimension_semantics<parallel>, #tpu.dimension_semantics<arbitrary>], iteration_bounds = array<i64: 1, 2, 1>, scalar_prefetch = 0 : i64, scratch_operands = 0 : i64, tpu.core_type = #tpu.core_type<tc>, window_params = [{transform_indices = @transform_0, window_bounds = array<i64: 8, 384>}, {transform_indices = @transform_1, window_bounds = array<i64: 128, 384>}, {transform_indices = @transform_2, window_bounds = array<i64: 8, 128>}]} {
    %c0_i32 = arith.constant 0 : i32
    %0 = arith.cmpi eq, %arg2, %c0_i32 : i32
    %1 = arith.extui %0 : i1 to i32
    %c0_i32_0 = arith.constant 0 : i32
    %2 = arith.cmpi ne, %1, %c0_i32_0 : i32
    scf.if %2 {
      %cst_8 = arith.constant 0.000000e+00 : f32
      %9 = vector.broadcast %cst_8 : f32 to vector<8x128xf32>
      %c0_9 = arith.constant 0 : index
      %c0_10 = arith.constant 0 : index
      %10 = vector.load %arg5[%c0_9, %c0_10] : memref<8x128xf32, #tpu.memory_space<vmem>>, vector<8x128xf32>
      tpu.vector_store %arg5[%c0_9, %c0_10], %9 {strides = array<i32>} : memref<8x128xf32, #tpu.memory_space<vmem>>, vector<8x128xf32>,
    } else {
    }
    %c0 = arith.constant 0 : index
    %c0_1 = arith.constant 0 : index
    %3 = vector.load %arg5[%c0, %c0_1] : memref<8x128xf32, #tpu.memory_space<vmem>>, vector<8x128xf32>
    %c0_2 = arith.constant 0 : index
    %c0_3 = arith.constant 0 : index
    %4 = vector.load %arg3[%c0_2, %c0_3] : memref<8x384xf32, #tpu.memory_space<vmem>>, vector<8x384xf32>
    %c0_4 = arith.constant 0 : index
    %c0_5 = arith.constant 0 : index
    %5 = vector.load %arg4[%c0_4, %c0_5] : memref<128x384xf32, #tpu.memory_space<vmem>>, vector<128x384xf32>
    %cst = arith.constant dense<0.000000e+00> : vector<8x128xf32>
    %6 = tpu.matmul %4, %5, %cst {dimension_numbers = #tpu.dot_dimension_numbers<[1], [1], [0], [0], [0, 0, 1, 0], [], []>} : vector<8x384xf32>, vector<128x384xf32>, vector<8x128xf32> -> vector<8x128xf32>
    %7 = arith.addf %3, %6 : vector<8x128xf32>
    %c0_6 = arith.constant 0 : index
    %c0_7 = arith.constant 0 : index
    %8 = vector.load %arg5[%c0_6, %c0_7] : memref<8x128xf32, #tpu.memory_space<vmem>>, vector<8x128xf32>
    tpu.vector_store %arg5[%c0_6, %c0_7], %7 {strides = array<i32>} : memref<8x128xf32, #tpu.memory_space<vmem>>, vector<8x128xf32>,
    return
  }
  func.func @transform_0(%arg0: i32, %arg1: i32, %arg2: i32) -> (i32, i32) {
    %c0_i32 = arith.constant 0 : i32
    return %arg0, %arg2 : i32, i32
  }
  func.func @transform_1(%arg0: i32, %arg1: i32, %arg2: i32) -> (i32, i32) {
    %c0_i32 = arith.constant 0 : i32
    return %arg1, %arg2 : i32, i32
  }
  func.func @transform_2(%arg0: i32, %arg1: i32, %arg2: i32) -> (i32, i32) {
    %c0_i32 = arith.constant 0 : i32
    return %arg0, %arg1 : i32, i32
  }
}

</mosaic_0001>

<llo_original>
// kernel: tpu_custom_call.1
$region0: #{tpu_custom_call.1}
  #allocation0 [shape = 'u32[]', space=smem, size = 0x4, offset = 0x4, fixed_abs, tag = 'smem constant byte address 0x4 - core index']
  #allocation1 [shape = 'u32[144,128]{1,0:T(1,128)}', space=vmem, size = 0x12000, scoped, tag = 'internal scratch']
  %s0 = inlined_call_operand.hbm [shape: f32[8,384], index: 0, kind: input, shape index: {}]
  %s1 = inlined_call_operand.hbm [shape: f32[256,384], index: 1, kind: input, shape index: {}]
  %s2 = inlined_call_operand.hbm [shape: f32[8,256], index: 2, kind: output, shape index: {}]
  %s3 = sld [smem:[#allocation0]]
  $region53: #{tpu_custom_call.1} parent=0
    _
  %s5 = ssub.s32 1, %s3
  %s6 = scalar_select 0, %s5, %s3
  $region1: #{tpu_custom_call.1} parent=0
    #allocation2 [shape = 'u8[12288]{0}', space=vmem, size = 0x3000, scoped, tag = 'input window, operand 0, single buffered']
    #allocation3 [shape = 's32[2]{0}', space=sflag, size = 0x8, scoped, tag = 'scoped memory for tpu_custom_call.1']
    #allocation4 [shape = 's32[2]{0}', space=sflag, size = 0x8, scoped, tag = 'scoped memory for tpu_custom_call.1']
    #allocation5 [shape = 'u8[393216]{0}', space=vmem, size = 0x60000, scoped, tag = 'input window, operand 1']
    #allocation6 [shape = 's32[2]{0}', space=sflag, size = 0x8, scoped, tag = 'scoped memory for tpu_custom_call.1']
    #allocation7 [shape = 'u8[8192]{0}', space=vmem, size = 0x2000, scoped, tag = 'output window, operand 0']
    %7 = vsyncpa [#allocation3], 0
    %8 = vsyncpa [#allocation6], 0
    %s9 = scalar_lea.sflag [#allocation6], 1
    %10 = vsyncpa %s9, 0
    %11 = vsyncpa [#allocation4], 0
    %s12 = scalar_lea.sflag [#allocation4], 1
    %13 = vsyncpa %s12, 0
    loop: start=0, step=1, limit=4
    $region2: #{tpu_custom_call.1} parent=1 // loop_pre_header
      _
    $region3: #{tpu_custom_call.1} parent=1 // loop_header
      %s15 = sphi 0, %s19
      %p16 = scmp.ge.s32.totalorder %s15, 4
      %s22 = sphi 0, %s41
      %s23 = sphi 0, %s37
      %s24 = sphi 0, %s33
      %s25 = sphi 0, %s22
      %s26 = sphi 0, %s23
      %s27 = sphi 0, %s24
      %s28 = sphi 0, %s25
      %s29 = sphi 0, %s26
      %s30 = sphi 0, %s27
      %s46 = sphi 0, %s48
      %s49 = sphi 0, %s46
      %s50 = sphi 0, %s49
      %s66 = sphi 0, %s50
      %s74 = sphi 0, %s76
      %s77 = sphi 0, %s74
      %s78 = sphi 0, %s77
      %s94 = sphi 0, %s78
      %s102 = sphi 0, %s104
      %s105 = sphi 0, %s102
      %s106 = sphi 0, %s105
      %s122 = sphi 0, %s106
    $region4: #{tpu_custom_call.1} parent=1 // loop_header_branch
      %18 = sbr.rel (%p16) target = $region8
    $region5: #{tpu_custom_call.1} parent=1 // loop_body
      %s20 = ssub.s32 %s15, 1
      %s21 = ssub.s32 %s15, 2
      %s31 = sadd.s32 1, %s24
      %p32 = scmp.ge.s32.totalorder %s31, 1
      %s33 = scalar_select %p32, 0, %s31
      %s34 = sadd.s32 1, %s23
      %s35 = scalar_select %p32, %s34, %s23
      %p36 = scmp.ge.s32.totalorder %s35, 2
      %s37 = scalar_select %p36, 0, %s35
      %s38 = sadd.s32 1, %s22
      %s39 = scalar_select %p36, %s38, %s22
      %p40 = scmp.ge.s32.totalorder %s39, 1
      %s41 = scalar_select %p40, 0, %s39
      %s42 = ssub.s32 %s22, %s41
      %s43 = ssub.s32 %s24, %s33
      %s44 = sor.u32 %s42, %s43
      %p45 = scmp.eq.s32.totalorder %s44, 0
      %s47 = sadd.s32 %s46, 1
      %s48 = scalar_select %p45, %s46, %s47
      %p51 = pneg %p45
      %p52 = scmp.eq.s32.totalorder %s15, 1
      %p53 = por %p51, %p52
      %p54 = scmp.ne.s32.totalorder %s46, %s49
      %p55 = scmp.eq.s32.totalorder %s15, 0
      %p56 = por %p54, %p55
      %p57 = scmp.ne.s32.totalorder %s46, %s49
      %p58 = scmp.eq.s32.totalorder %s20, 1
      %p59 = por %p57, %p58
      %p60 = scmp.ne.s32.totalorder %s49, %s50
      %p61 = scmp.eq.s32.totalorder %s20, 0
      %p62 = por %p60, %p61
      %p63 = scmp.ne.s32.totalorder %s49, %s50
      %p64 = scmp.eq.s32.totalorder %s21, 1
      %p65 = por %p63, %p64
      %p67 = scmp.ne.s32.totalorder %s50, %s66
      %p68 = scmp.eq.s32.totalorder %s21, 0
      %p69 = por %p67, %p68
      %s70 = ssub.s32 %s23, %s37
      %s71 = ssub.s32 %s24, %s33
      %s72 = sor.u32 %s70, %s71
      %p73 = scmp.eq.s32.totalorder %s72, 0
      %s75 = sadd.s32 %s74, 1
      %s76 = scalar_select %p73, %s74, %s75
      %p79 = pneg %p73
      %p80 = scmp.eq.s32.totalorder %s15, 1
      %p81 = por %p79, %p80
      %p82 = scmp.ne.s32.totalorder %s74, %s77
      %p83 = scmp.eq.s32.totalorder %s15, 0
      %p84 = por %p82, %p83
      %p85 = scmp.ne.s32.totalorder %s74, %s77
      %p86 = scmp.eq.s32.totalorder %s20, 1
      %p87 = por %p85, %p86
      %p88 = scmp.ne.s32.totalorder %s77, %s78
      %p89 = scmp.eq.s32.totalorder %s20, 0
      %p90 = por %p88, %p89
      %p91 = scmp.ne.s32.totalorder %s77, %s78
      %p92 = scmp.eq.s32.totalorder %s21, 1
      %p93 = por %p91, %p92
      %p95 = scmp.ne.s32.totalorder %s78, %s94
      %p96 = scmp.eq.s32.totalorder %s21, 0
      %p97 = por %p95, %p96
      %s98 = ssub.s32 %s22, %s41
      %s99 = ssub.s32 %s23, %s37
      %s100 = sor.u32 %s98, %s99
      %p101 = scmp.eq.s32.totalorder %s100, 0
      %s103 = sadd.s32 %s102, 1
      %s104 = scalar_select %p101, %s102, %s103
      %p107 = pneg %p101
      %p108 = scmp.eq.s32.totalorder %s15, 1
      %p109 = por %p107, %p108
      %p110 = scmp.ne.s32.totalorder %s102, %s105
      %p111 = scmp.eq.s32.totalorder %s15, 0
      %p112 = por %p110, %p111
      %p113 = scmp.ne.s32.totalorder %s102, %s105
      %p114 = scmp.eq.s32.totalorder %s20, 1
      %p115 = por %p113, %p114
      %p116 = scmp.ne.s32.totalorder %s105, %s106
      %p117 = scmp.eq.s32.totalorder %s20, 0
      %p118 = por %p116, %p117
      %p119 = scmp.ne.s32.totalorder %s105, %s106
      %p120 = scmp.eq.s32.totalorder %s21, 1
      %p121 = por %p119, %p120
      %p123 = scmp.ne.s32.totalorder %s106, %s122
      %p124 = scmp.eq.s32.totalorder %s21, 0
      %p125 = por %p123, %p124
      %p126 = scmp.le.s32.totalorder 1, %s15
      %p127 = scmp.lt.s32.totalorder %s15, 3
      %p128 = pnand %p126, %p127
      %p129 = pneg %p128
      // Predicated region
      $region9: #{tpu_custom_call.1} parent=5 // pred_check
        _
      $region10: #{tpu_custom_call.1} parent=5 // pred_check_branch
        %131 = sbr.rel (%p128) target = $region12
      $region11: #{tpu_custom_call.1} parent=5 // pred_region
        %s132 = ssub.s32 %s15, 1
        // Predicated region
        $region13: #{tpu_custom_call.1} parent=11 // pred_check
          %p133 = pneg %p62
        $region14: #{tpu_custom_call.1} parent=11 // pred_check_branch
          %135 = sbr.rel (%p133) target = $region16
        $region15: #{tpu_custom_call.1} parent=11 // pred_region
          %s136 = smul.u32 3, %s27
          %s138 = ssub.s32 384, 384
          %139 = vsyncadd [#allocation3], %s138
          %s140 = smul.addr %s25, 3
          %s141 = sadd.s32 %s136, %s140
          %s142 = smul.addr %s141, 128
          %s143 = scalar_lea.hbm %s0, %s142
          %s145 = sshll.u32 [#allocation2], 4
          %s146 = int_to_ptr.vmem [resolvable:$true] %s145
          %148 = dma.hbm_to_vmem [thread:$0]  %s143, 384, %s146, [#allocation3]
        $region16: #{tpu_custom_call.1} parent=11 // pred_fallthru
          _
      $region12: #{tpu_custom_call.1} parent=5 // pred_fallthru
        _
      %p149 = scmp.lt.s32.totalorder %s15, 2
      // Predicated region
      $region17: #{tpu_custom_call.1} parent=5 // pred_check
        %p150 = pneg %p149
      $region18: #{tpu_custom_call.1} parent=5 // pred_check_branch
        %152 = sbr.rel (%p150) target = $region20
      $region19: #{tpu_custom_call.1} parent=5 // pred_region
        // Predicated region
        $region21: #{tpu_custom_call.1} parent=19 // pred_check
          %p153 = pneg %p84
        $region22: #{tpu_custom_call.1} parent=19 // pred_check_branch
          %155 = sbr.rel (%p153) target = $region24
        $region23: #{tpu_custom_call.1} parent=19 // pred_region
          %s156 = sand.u32 %s74, 1
          %s157 = scalar_lea.sflag [#allocation6], %s156
          %s158 = sand.u32 %s74, 1
          %s159 = smul.addr %s158, 384
          %s160 = scalar_lea.vmem [#allocation5], %s159
          %s161 = smul.u32 16, %s23
          %s162 = smul.u32 3, %s24
          %s164 = ssub.s32 6144, 6144
          %165 = vsyncadd %s157, %s164
          %s166 = smul.addr %s161, 3
          %s167 = sadd.s32 %s162, %s166
          %s168 = smul.addr %s167, 128
          %s169 = scalar_lea.hbm %s1, %s168
          %s170 = sshll.u32 %s160, 4
          %s171 = int_to_ptr.vmem [resolvable:$true] %s170
          %176 = dma.hbm_to_vmem [thread:$0]  %s169, 6144, %s171, %s157, 384, 384, 24
        $region24: #{tpu_custom_call.1} parent=19 // pred_fallthru
          _
      $region20: #{tpu_custom_call.1} parent=5 // pred_fallthru
        _
      %p177 = scmp.le.s32.totalorder 1, %s15
      %p178 = scmp.lt.s32.totalorder %s15, 3
      %p179 = pnand %p177, %p178
      %p180 = pneg %p179
      // Predicated region
      $region25: #{tpu_custom_call.1} parent=5 // pred_check
        _
      $region26: #{tpu_custom_call.1} parent=5 // pred_check_branch
        %182 = sbr.rel (%p179) target = $region28
      $region27: #{tpu_custom_call.1} parent=5 // pred_region
        %s183 = ssub.s32 %s15, 1
        // Predicated region
        $region29: #{tpu_custom_call.1} parent=27 // pred_check
          %p184 = pneg %p62
        $region30: #{tpu_custom_call.1} parent=27 // pred_check_branch
          %186 = sbr.rel (%p184) target = $region32
        $region31: #{tpu_custom_call.1} parent=27 // pred_region
          %187 = dma.done [#allocation3], 384
        $region32: #{tpu_custom_call.1} parent=27 // pred_fallthru
          _
        %s188 = sand.u32 %s77, 1
        %s189 = scalar_lea.sflag [#allocation6], %s188
        %s190 = sand.u32 %s77, 1
        %s191 = smul.addr %s190, 384
        %s192 = scalar_lea.vmem [#allocation5], %s191
        // Predicated region
        $region33: #{tpu_custom_call.1} parent=27 // pred_check
          %p193 = pneg %p90
        $region34: #{tpu_custom_call.1} parent=27 // pred_check_branch
          %195 = sbr.rel (%p193) target = $region36
        $region35: #{tpu_custom_call.1} parent=27 // pred_region
          %196 = dma.done %s189, 6144
        $region36: #{tpu_custom_call.1} parent=27 // pred_fallthru
          _
        %p197 = pneg %p62
        %p198 = pneg %p59
        %s199 = sand.u32 %s77, 1
        %s200 = scalar_lea.sflag [#allocation6], %s199
        %s201 = sand.u32 %s77, 1
        %s202 = smul.addr %s201, 384
        %s203 = scalar_lea.vmem [#allocation5], %s202
        %p204 = pneg %p90
        %p205 = pneg %p87
        %p206 = pneg %p118
        %p207 = pneg %p115
        %s208 = sand.u32 %s105, 1
        %s209 = scalar_lea.sflag [#allocation4], %s208
        %s210 = sand.u32 %s105, 1
        %s211 = smul.addr %s210, 8
        %s212 = scalar_lea.vmem [#allocation7], %s211
        %s213 = smul.u32 3, %s27
        %s214 = smul.u32 16, %s26
        %s215 = smul.u32 3, %s27
        %p216 = scmp.eq.s32.totalorder %s27, 0
        // Predicated region
        $region37: #{tpu_custom_call.1} parent=27 // pred_check
          %p217 = pneg %p216
        $region38: #{tpu_custom_call.1} parent=27 // pred_check_branch
          %219 = sbr.rel (%p217) target = $region40
        $region39: #{tpu_custom_call.1} parent=27 // pred_region
          %220 = vst [vmem:[%s212] sm:$0xff] 0.0
        $region40: #{tpu_custom_call.1} parent=27 // pred_fallthru
          _
        %v221 = vld [vmem:[%s212] sm:$0xff]
        %v222 = vld [vmem:[#allocation2] sm:$0xff]
        %v223 = vld [vmem:[#allocation2 + $0x8] sm:$0xff]
        %v224 = vld [vmem:[#allocation2 + $0x10] sm:$0xff]
        %v225 = vld [vmem:[%s192] sm:$0xff]
        %v226 = vld [vmem:[%s192 + $0x8] sm:$0xff]
        %v227 = vld [vmem:[%s192 + $0x10] sm:$0xff]
        %v228 = vld [vmem:[%s192 + $0x18] sm:$0xff]
        %v229 = vld [vmem:[%s192 + $0x20] sm:$0xff]
        %v230 = vld [vmem:[%s192 + $0x28] sm:$0xff]
        %v231 = vld [vmem:[%s192 + $0x30] sm:$0xff]
        %v232 = vld [vmem:[%s192 + $0x38] sm:$0xff]
        %v233 = vld [vmem:[%s192 + $0x40] sm:$0xff]
        %v234 = vld [vmem:[%s192 + $0x48] sm:$0xff]
        %v235 = vld [vmem:[%s192 + $0x50] sm:$0xff]
        %v236 = vld [vmem:[%s192 + $0x58] sm:$0xff]
        %v237 = vld [vmem:[%s192 + $0x60] sm:$0xff]
        %v238 = vld [vmem:[%s192 + $0x68] sm:$0xff]
        %v239 = vld [vmem:[%s192 + $0x70] sm:$0xff]
        %v240 = vld [vmem:[%s192 + $0x78] sm:$0xff]
        %v241 = vld [vmem:[%s192 + $0x80] sm:$0xff]
        %v242 = vld [vmem:[%s192 + $0x88] sm:$0xff]
        %v243 = vld [vmem:[%s192 + $0x90] sm:$0xff]
        %v244 = vld [vmem:[%s192 + $0x98] sm:$0xff]
        %v245 = vld [vmem:[%s192 + $0xa0] sm:$0xff]
        %v246 = vld [vmem:[%s192 + $0xa8] sm:$0xff]
        %v247 = vld [vmem:[%s192 + $0xb0] sm:$0xff]
        %v248 = vld [vmem:[%s192 + $0xb8] sm:$0xff]
        %v249 = vld [vmem:[%s192 + $0xc0] sm:$0xff]
        %v250 = vld [vmem:[%s192 + $0xc8] sm:$0xff]
        %v251 = vld [vmem:[%s192 + $0xd0] sm:$0xff]
        %v252 = vld [vmem:[%s192 + $0xd8] sm:$0xff]
        %v253 = vld [vmem:[%s192 + $0xe0] sm:$0xff]
        %v254 = vld [vmem:[%s192 + $0xe8] sm:$0xff]
        %v255 = vld [vmem:[%s192 + $0xf0] sm:$0xff]
        %v256 = vld [vmem:[%s192 + $0xf8] sm:$0xff]
        %v257 = vld [vmem:[%s192 + $0x100] sm:$0xff]
        %v258 = vld [vmem:[%s192 + $0x108] sm:$0xff]
        %v259 = vld [vmem:[%s192 + $0x110] sm:$0xff]
        %v260 = vld [vmem:[%s192 + $0x118] sm:$0xff]
        %v261 = vld [vmem:[%s192 + $0x120] sm:$0xff]
        %v262 = vld [vmem:[%s192 + $0x128] sm:$0xff]
        %v263 = vld [vmem:[%s192 + $0x130] sm:$0xff]
        %v264 = vld [vmem:[%s192 + $0x138] sm:$0xff]
        %v265 = vld [vmem:[%s192 + $0x140] sm:$0xff]
        %v266 = vld [vmem:[%s192 + $0x148] sm:$0xff]
        %v267 = vld [vmem:[%s192 + $0x150] sm:$0xff]
        %v268 = vld [vmem:[%s192 + $0x158] sm:$0xff]
        %v269 = vld [vmem:[%s192 + $0x160] sm:$0xff]
        %v270 = vld [vmem:[%s192 + $0x168] sm:$0xff]
        %v271 = vld [vmem:[%s192 + $0x170] sm:$0xff]
        %v272 = vld [vmem:[%s192 + $0x178] sm:$0xff]
        %273 = vmatprep.subr.mxu0 %v226
        %274 = vmatpush1.xpose.msra.mxu0 %v225
        %275 = vmatprep.subr.mxu0 %v229
        %276 = vmatpush1.xpose.msra.mxu0 %v228
        %277 = vmatprep.subr.mxu0 %v232
        %278 = vmatpush1.xpose.msra.mxu0 %v231
        %279 = vmatprep.subr.mxu0 %v235
        %280 = vmatpush1.xpose.msra.mxu0 %v234
        %281 = vmatprep.subr.mxu0 %v238
        %282 = vmatpush1.xpose.msra.mxu0 %v237
        %283 = vmatprep.subr.mxu0 %v241
        %284 = vmatpush1.xpose.msra.mxu0 %v240
        %285 = vmatprep.subr.mxu0 %v244
        %286 = vmatpush1.xpose.msra.mxu0 %v243
        %287 = vmatprep.subr.mxu0 %v247
        %288 = vmatpush1.xpose.msra.mxu0 %v246
        %289 = vmatprep.subr.mxu0 %v250
        %290 = vmatpush1.xpose.msra.mxu0 %v249
        %291 = vmatprep.subr.mxu0 %v253
        %292 = vmatpush1.xpose.msra.mxu0 %v252
        %293 = vmatprep.subr.mxu0 %v256
        %294 = vmatpush1.xpose.msra.mxu0 %v255
        %295 = vmatprep.subr.mxu0 %v259
        %296 = vmatpush1.xpose.msra.mxu0 %v258
        %297 = vmatprep.subr.mxu0 %v262
        %298 = vmatpush1.xpose.msra.mxu0 %v261
        %299 = vmatprep.subr.mxu0 %v265
        %300 = vmatpush1.xpose.msra.mxu0 %v264
        %301 = vmatprep.subr.mxu0 %v268
        %302 = vmatpush1.xpose.msra.mxu0 %v267
        %303 = vmatprep.subr.mxu0 %v271
        %304 = vmatpush1.xpose.msra.mxu0 %v270
        %305 = vmatprep.subr.mxu0 0.0
        %306 = vmatpush1.xpose.msra.mxu0 0.0
        %307 = vmatprep.subr.mxu0 0.0
        %308 = vmatpush1.xpose.msra.mxu0 0.0
        %309 = vmatprep.subr.mxu0 0.0
        %310 = vmatpush1.xpose.msra.mxu0 0.0
        %311 = vmatprep.subr.mxu0 0.0
        %312 = vmatpush1.xpose.msra.mxu0 0.0
        %313 = vmatprep.subr.mxu0 0.0
        %314 = vmatpush1.xpose.msra.mxu0 0.0
        %315 = vmatprep.subr.mxu0 0.0
        %316 = vmatpush1.xpose.msra.mxu0 0.0
        %317 = vmatprep.subr.mxu0 0.0
        %318 = vmatpush1.xpose.msra.mxu0 0.0
        %319 = vmatprep.subr.mxu0 0.0
        %320 = vmatpush1.xpose.msra.mxu0 0.0
        %321 = vmatprep.subr.mxu0 0.0
        %322 = vmatpush1.xpose.msra.mxu0 0.0
        %323 = vmatprep.subr.mxu0 0.0
        %324 = vmatpush1.xpose.msra.mxu0 0.0
        %325 = vmatprep.subr.mxu0 0.0
        %326 = vmatpush1.xpose.msra.mxu0 0.0
        %327 = vmatprep.subr.mxu0 0.0
        %328 = vmatpush1.xpose.msra.mxu0 0.0
        %329 = vmatprep.subr.mxu0 0.0
        %330 = vmatpush1.xpose.msra.mxu0 0.0
        %331 = vmatprep.subr.mxu0 0.0
        %332 = vmatpush1.xpose.msra.mxu0 0.0
        %333 = vmatprep.subr.mxu0 0.0
        %334 = vmatpush1.xpose.msra.mxu0 0.0
        %335 = vmatprep.subr.mxu0 0.0
        %336 = vmatpush1.xpose.msra.mxu0 0.0
        %337 = vmatprep.mubr.f32.mxu0 %v223
        %338 = vmatmul.mubr.f32.gmra.mrb[0].mxu0 %v222
        %v339 = vpop.f32.mrb[0].mxu0
        %v340 = vadd.f32 0.0, %v339
        %v341 = vpop.f32.mrb[0].mxu0
        %342 = vdwg.mxu0
        %343 = vmatprep.subr.mxu0 0.0
        %344 = vmatpush1.xpose.msra.mxu0 %v227
        %345 = vmatprep.subr.mxu0 0.0
        %346 = vmatpush1.xpose.msra.mxu0 %v230
        %347 = vmatprep.subr.mxu0 0.0
        %348 = vmatpush1.xpose.msra.mxu0 %v233
        %349 = vmatprep.subr.mxu0 0.0
        %350 = vmatpush1.xpose.msra.mxu0 %v236
        %351 = vmatprep.subr.mxu0 0.0
        %352 = vmatpush1.xpose.msra.mxu0 %v239
        %353 = vmatprep.subr.mxu0 0.0
        %354 = vmatpush1.xpose.msra.mxu0 %v242
        %355 = vmatprep.subr.mxu0 0.0
        %356 = vmatpush1.xpose.msra.mxu0 %v245
        %357 = vmatprep.subr.mxu0 0.0
        %358 = vmatpush1.xpose.msra.mxu0 %v248
        %359 = vmatprep.subr.mxu0 0.0
        %360 = vmatpush1.xpose.msra.mxu0 %v251
        %361 = vmatprep.subr.mxu0 0.0
        %362 = vmatpush1.xpose.msra.mxu0 %v254
        %363 = vmatprep.subr.mxu0 0.0
        %364 = vmatpush1.xpose.msra.mxu0 %v257
        %365 = vmatprep.subr.mxu0 0.0
        %366 = vmatpush1.xpose.msra.mxu0 %v260
        %367 = vmatprep.subr.mxu0 0.0
        %368 = vmatpush1.xpose.msra.mxu0 %v263
        %369 = vmatprep.subr.mxu0 0.0
        %370 = vmatpush1.xpose.msra.mxu0 %v266
        %371 = vmatprep.subr.mxu0 0.0
        %372 = vmatpush1.xpose.msra.mxu0 %v269
        %373 = vmatprep.subr.mxu0 0.0
        %374 = vmatpush1.xpose.msra.mxu0 %v272
        %375 = vmatprep.subr.mxu0 0.0
        %376 = vmatpush1.xpose.msra.mxu0 0.0
        %377 = vmatprep.subr.mxu0 0.0
        %378 = vmatpush1.xpose.msra.mxu0 0.0
        %379 = vmatprep.subr.mxu0 0.0
        %380 = vmatpush1.xpose.msra.mxu0 0.0
        %381 = vmatprep.subr.mxu0 0.0
        %382 = vmatpush1.xpose.msra.mxu0 0.0
        %383 = vmatprep.subr.mxu0 0.0
        %384 = vmatpush1.xpose.msra.mxu0 0.0
        %385 = vmatprep.subr.mxu0 0.0
        %386 = vmatpush1.xpose.msra.mxu0 0.0
        %387 = vmatprep.subr.mxu0 0.0
        %388 = vmatpush1.xpose.msra.mxu0 0.0
        %389 = vmatprep.subr.mxu0 0.0
        %390 = vmatpush1.xpose.msra.mxu0 0.0
        %391 = vmatprep.subr.mxu0 0.0
        %392 = vmatpush1.xpose.msra.mxu0 0.0
        %393 = vmatprep.subr.mxu0 0.0
        %394 = vmatpush1.xpose.msra.mxu0 0.0
        %395 = vmatprep.subr.mxu0 0.0
        %396 = vmatpush1.xpose.msra.mxu0 0.0
        %397 = vmatprep.subr.mxu0 0.0
        %398 = vmatpush1.xpose.msra.mxu0 0.0
        %399 = vmatprep.subr.mxu0 0.0
        %400 = vmatpush1.xpose.msra.mxu0 0.0
        %401 = vmatprep.subr.mxu0 0.0
        %402 = vmatpush1.xpose.msra.mxu0 0.0
        %403 = vmatprep.subr.mxu0 0.0
        %404 = vmatpush1.xpose.msra.mxu0 0.0
        %405 = vmatprep.subr.mxu0 0.0
        %406 = vmatpush1.xpose.msra.mxu0 0.0
        %407 = vmatprep.mubr.f32.mxu0 0.0
        %408 = vmatmul.mubr.f32.gmra.mrb[0].mxu0 %v224
        %v409 = vpop.f32.mrb[0].mxu0
        %v410 = vadd.f32 %v340, %v409
        %v411 = vpop.f32.mrb[0].mxu0
        %412 = vdwg.mxu0
        %v413 = vadd.f32 %v221, %v410
        %414 = vst [vmem:[%s212] sm:$0xff] %v413
        %s415 = sand.u32 %s105, 1
        %s416 = scalar_lea.sflag [#allocation4], %s415
        %s417 = sand.u32 %s105, 1
        %s418 = smul.addr %s417, 8
        %s419 = scalar_lea.vmem [#allocation7], %s418
        // Predicated region
        $region41: #{tpu_custom_call.1} parent=27 // pred_check
          %p420 = pneg %p115
        $region42: #{tpu_custom_call.1} parent=27 // pred_check_branch
          %422 = sbr.rel (%p420) target = $region44
        $region43: #{tpu_custom_call.1} parent=27 // pred_region
          %s424 = ssub.s32 128, 128
          %425 = vsyncadd %s416, %s424
          %s426 = smul.addr %s25, 2
          %s427 = sadd.s32 %s26, %s426
          %s428 = smul.addr %s427, 128
          %s429 = scalar_lea.hbm %s2, %s428
          %s431 = sshll.u32 %s419, 4
          %s432 = int_to_ptr.vmem [resolvable:$true] %s431
          %434 = dma.vmem_to_hbm [thread:$0]  %s432, 128, %s429, %s416
        $region44: #{tpu_custom_call.1} parent=27 // pred_fallthru
          _
      $region28: #{tpu_custom_call.1} parent=5 // pred_fallthru
        _
      %p435 = scmp.le.s32.totalorder 2, %s15
      // Predicated region
      $region45: #{tpu_custom_call.1} parent=5 // pred_check
        %p436 = pneg %p435
      $region46: #{tpu_custom_call.1} parent=5 // pred_check_branch
        %438 = sbr.rel (%p436) target = $region48
      $region47: #{tpu_custom_call.1} parent=5 // pred_region
        %s439 = ssub.s32 %s15, 2
        // Predicated region
        $region49: #{tpu_custom_call.1} parent=47 // pred_check
          %p440 = pneg %p121
        $region50: #{tpu_custom_call.1} parent=47 // pred_check_branch
          %442 = sbr.rel (%p440) target = $region52
        $region51: #{tpu_custom_call.1} parent=47 // pred_region
          %s443 = sand.u32 %s106, 1
          %s444 = scalar_lea.sflag [#allocation4], %s443
          %s445 = sand.u32 %s106, 1
          %s446 = smul.addr %s445, 8
          %s447 = scalar_lea.vmem [#allocation7], %s446
          %448 = dma.done %s444, 128
        $region52: #{tpu_custom_call.1} parent=47 // pred_fallthru
          _
      $region48: #{tpu_custom_call.1} parent=5 // pred_fallthru
        _
    $region6: #{tpu_custom_call.1} parent=1 // loop_footer
      %s19 = sadd.s32 1, %s15
    $region7: #{tpu_custom_call.1} parent=1 // loop_footer_branch
      %14 = sbr.rel target = $region3
    $region8: #{tpu_custom_call.1} parent=1 // loop_exit
      _
    %449 = vsyncpa [#allocation3], 1
    %s450 = scalar_lea.sflag [#allocation3], 1
    %451 = vsyncpa %s450, 1
    %452 = vsyncpa [#allocation6], 1
    %s453 = scalar_lea.sflag [#allocation6], 1
    %454 = vsyncpa %s453, 1
    %455 = vsyncpa [#allocation4], 1
    %s456 = scalar_lea.sflag [#allocation4], 1
    %457 = vsyncpa %s456, 1

</llo_original>
